<compile_context>
chip_gen: v5e
topology: v5e:2x2
jax: 0.10.0
libtpu: 0.0.40
codegen_flags: <defaults>
</compile_context>

<pallas_src>
import math
import functools

import jax
import jax.numpy as jnp
from jax.experimental import pallas as pl
from jax.experimental.pallas import tpu as pltpu


def _round_up(x: int, m: int) -> int:
    return ((x + m - 1) // m) * m


# ---------------------------------------------------------------------------
# Generation-specific tile table (tm_max, tn_max, tk_max, vmem_cap_bytes).
# ---------------------------------------------------------------------------
def _tpu_tile_table():
    kind = ""
    try:
        kind = jax.devices()[0].device_kind.lower()
    except Exception:
        pass
    if "v5 lite" in kind or "v5lite" in kind or "v5e" in kind:
        # v5e: 197 TF/s vs ~0.82 TB/s -> ~240 FLOP/B knee; (512,512) gives 256 FLOP/B,
        # ~6-7 MiB double-buffered.
        return 512, 512, 1024, 96 << 20
    if "v6" in kind:
        # v6e: 918 TF/s vs ~1.4 TB/s -> needs ~650 FLOP/B; (1024,1024) gives 512 FLOP/B,
        # ~16 MiB double-buffered (128 MiB physical VMEM).
        return 1024, 1024, 1024, 96 << 20
    if "v7" in kind:
        # v7x: ~311 FLOP/B threshold, only 64 MiB physical VMEM per TC;
        # (1024,512) gives ~341 FLOP/B at ~10 MiB double-buffered.
        return 1024, 512, 1024, 48 << 20
    # Unknown / fallback: safe everywhere (~10 MiB double-buffered, ~341 FLOP/B).
    return 1024, 512, 1024, 48 << 20


def _select_tiles(m: int, dim_in: int, dim_out: int):
    tm_max, tn_max, tk_max, vmem_cap = _tpu_tile_table()
    tm = min(tm_max, _round_up(m, 16))          # multiple of 16: bf16 native sublane tile
    tn = min(tn_max, _round_up(dim_out, 128))
    tk = min(tk_max, _round_up(dim_in, 128))
    return tm, tn, tk, vmem_cap


def _vmem_limit_bytes(tm, tn, tk, in_itemsize, out_itemsize, cap):
    need = (2 * tm * tk * in_itemsize     # x tile, double-buffered
            + 2 * tk * tn * in_itemsize   # w tile, double-buffered
            + 2 * tm * tn * out_itemsize  # out tile, double-buffered
            + tm * tn * 4)                # f32 accumulator scratch
    return int(max(32 << 20, min(need + (16 << 20), cap)))


# ---------------------------------------------------------------------------
# One-time (init-time) weight preparation: transpose to (dim_in, dim_out) and
# zero-pad K to a tile multiple so the hot path never touches W layout again.
# ---------------------------------------------------------------------------
def prepare_weight(weight: jax.Array) -> jax.Array:
    """weight: (dim_out, dim_in) PyTorch layout -> (k_pad, dim_out), K zero-padded."""
    dim_out, dim_in = weight.shape
    _, _, tk, _ = _select_tiles(16, dim_in, dim_out)   # tk depends only on dim_in
    k_pad = _round_up(dim_in, tk)
    w_t = jnp.asarray(weight, dtype=jnp.bfloat16).T     # (dim_in, dim_out)
    if k_pad != dim_in:
        w_t = jnp.pad(w_t, ((0, k_pad - dim_in), (0, 0)))
    return w_t


# ---------------------------------------------------------------------------
# Kernel: (tm, tk) x (tk, tn) -> (tm, tn) with resident f32 accumulator.
# ---------------------------------------------------------------------------
def _linear_kernel(x_ref, w_ref, o_ref, acc_ref, *, out_scale: float):
    @pl.when(pl.program_id(2) == 0)
    def _():
        acc_ref[...] = jnp.zeros_like(acc_ref)

    acc_ref[...] += jnp.dot(
        x_ref[...], w_ref[...], preferred_element_type=jnp.float32
    )

    @pl.when(pl.program_id(2) == pl.num_programs(2) - 1)
    def _():
        # scale_before: x/sqrt(dim_in) before the matmul == scaling the f32 accumulator once.
        o_ref[...] = (acc_ref[...] * out_scale).astype(o_ref.dtype)


def linear_forward(
    x: jax.Array,
    weight_t: jax.Array,
    *,
    scale_before: bool = True,
) -> jax.Array:
    """x: (batch, seq_len, dim_in); weight_t: prepare_weight output (k_pad, dim_out)."""
    batch, seq_len, dim_in = x.shape
    k_pad_w, dim_out = weight_t.shape

    m = batch * seq_len
    x2d = x.reshape(m, dim_in)

    tm, tn, tk, vmem_cap = _select_tiles(m, dim_in, dim_out)
    k_pad = _round_up(dim_in, tk)
    assert k_pad_w == k_pad, "weight_t was prepared with a different dim_in / tile table"

    # Only K needs zero-padding (stale data along K would corrupt valid outputs).
    if k_pad != dim_in:
        x2d = jnp.pad(x2d, ((0, 0), (0, k_pad - dim_in)))

    grid_m = pl.cdiv(m, tm)
    grid_n = pl.cdiv(dim_out, tn)
    grid_k = k_pad // tk

    out_scale = (1.0 / math.sqrt(dim_in)) if scale_before else 1.0
    kernel = functools.partial(_linear_kernel, out_scale=out_scale)

    # Megacore: put the larger of the two parallel axes first so both TensorCores get work;
    # for decode-sized M this makes N the split axis (each core streams half of W). K stays
    # last (reduction, resident accumulator).
    if grid_m < grid_n:
        grid = (grid_n, grid_m, grid_k)
        x_spec = pl.BlockSpec((tm, tk), lambda j, i, k: (i, k))
        w_spec = pl.BlockSpec((tk, tn), lambda j, i, k: (k, j))
        o_spec = pl.BlockSpec((tm, tn), lambda j, i, k: (i, j))
    else:
        grid = (grid_m, grid_n, grid_k)
        x_spec = pl.BlockSpec((tm, tk), lambda i, j, k: (i, k))
        w_spec = pl.BlockSpec((tk, tn), lambda i, j, k: (k, j))
        o_spec = pl.BlockSpec((tm, tn), lambda i, j, k: (i, j))

    in_itemsize = jnp.dtype(x.dtype).itemsize
    out_itemsize = jnp.dtype(x.dtype).itemsize
    cost = pl.CostEstimate(
        flops=2 * m * dim_out * k_pad,
        transcendentals=0,
        # Tile re-reads: x is streamed once per N-tile, W once per M-tile.
        bytes_accessed=(m * k_pad * grid_n + k_pad * dim_out * grid_m) * in_itemsize
        + m * dim_out * out_itemsize,
    )

    out2d = pl.pallas_call(
        kernel,
        out_shape=jax.ShapeDtypeStruct((m, dim_out), x.dtype),
        grid_spec=pltpu.PrefetchScalarGridSpec(
            num_scalar_prefetch=0,
            grid=grid,
            in_specs=[x_spec, w_spec],
            out_specs=o_spec,
            scratch_shapes=[pltpu.VMEM((tm, tn), jnp.float32)],
        ),
        compiler_params=pltpu.CompilerParams(
            dimension_semantics=("parallel", "parallel", "arbitrary"),
            vmem_limit_bytes=_vmem_limit_bytes(tm, tn, tk, in_itemsize, out_itemsize, vmem_cap),
        ),
        cost_estimate=cost,
    )(x2d, weight_t)

    return out2d.reshape(batch, seq_len, dim_out)


if __name__ == "__main__":
    # Small shapes consistent with the module's forward: (batch, seq_len, dim_in)
    batch, seq_len, dim_in, dim_out = 2, 8, 32, 64
    init_mean, init_std = 0.0, 1.0

    key = jax.random.PRNGKey(0)
    kx, kw = jax.random.split(key)

    # Deterministic parameter init mirroring torch.nn.init.normal_(mean, std).
    # TODO(synk): PyTorch default dtype here is fp16; we substitute bf16 (TPU MXU-native).
    weight = (
        init_mean + init_std * jax.random.normal(kw, (dim_out, dim_in), dtype=jnp.float32)
    ).astype(jnp.bfloat16)
    x = jax.random.normal(kx, (batch, seq_len, dim_in), dtype=jnp.float32).astype(jnp.bfloat16)

    # One-time weight prep (transpose + K pad) — outside the per-call hot path.
    weight_t = prepare_weight(weight)

    y = linear_forward(x, weight_t, scale_before=True)
    jax.block_until_ready(y)

    # Reference check in plain JAX against the original (dim_out, dim_in) weight.
    y_ref = jnp.einsum(
        "bsk,nk->bsn",
        x.astype(jnp.float32) / math.sqrt(dim_in),
        weight.astype(jnp.float32),
    ).astype(jnp.bfloat16)
    assert y.shape == (batch, seq_len, dim_out)
    assert jnp.allclose(y.astype(jnp.float32), y_ref.astype(jnp.float32), atol=1e-1, rtol=1e-1)

    print("KERNEL_OK")
</pallas_src>

<mosaic_0001>
module attributes {stable_mosaic.version = 11 : i64} {
  func.func @_linear_kernel(%arg0: i32, %arg1: i32, %arg2: i32, %arg3: memref<16x128xbf16, #tpu.memory_space<vmem>>, %arg4: memref<128x128xbf16, #tpu.memory_space<vmem>>, %arg5: memref<16x128xbf16, #tpu.memory_space<vmem>>, %arg6: memref<16x128xf32, #tpu.memory_space<vmem>>) attributes {dimension_semantics = [#tpu.dimension_semantics<parallel>, #tpu.dimension_semantics<parallel>, #tpu.dimension_semantics<arbitrary>], iteration_bounds = array<i64: 1, 1, 1>, scalar_prefetch = 0 : i64, scratch_operands = 1 : i64, tpu.core_type = #tpu.core_type<tc>, window_params = [{transform_indices = @transform_0, window_bounds = array<i64: 16, 128>}, {transform_indices = @transform_1, window_bounds = array<i64: 128, 128>}, {transform_indices = @transform_2, window_bounds = array<i64: 16, 128>}]} {
    %c0_i32 = arith.constant 0 : i32
    %0 = arith.cmpi eq, %arg2, %c0_i32 : i32
    %1 = arith.extui %0 : i1 to i32
    %c0_i32_0 = arith.constant 0 : i32
    %2 = arith.cmpi ne, %1, %c0_i32_0 : i32
    scf.if %2 {
      %cst_10 = arith.constant 0.000000e+00 : f32
      %12 = vector.broadcast %cst_10 : f32 to vector<16x128xf32>
      %c0_11 = arith.constant 0 : index
      %c0_12 = arith.constant 0 : index
      %13 = vector.load %arg6[%c0_11, %c0_12] : memref<16x128xf32, #tpu.memory_space<vmem>>, vector<16x128xf32>
      tpu.vector_store %arg6[%c0_11, %c0_12], %12 {strides = array<i32>} : memref<16x128xf32, #tpu.memory_space<vmem>>, vector<16x128xf32>,
    } else {
    }
    %c0 = arith.constant 0 : index
    %c0_1 = arith.constant 0 : index
    %3 = vector.load %arg6[%c0, %c0_1] : memref<16x128xf32, #tpu.memory_space<vmem>>, vector<16x128xf32>
    %c0_2 = arith.constant 0 : index
    %c0_3 = arith.constant 0 : index
    %4 = vector.load %arg3[%c0_2, %c0_3] : memref<16x128xbf16, #tpu.memory_space<vmem>>, vector<16x128xbf16>
    %c0_4 = arith.constant 0 : index
    %c0_5 = arith.constant 0 : index
    %5 = vector.load %arg4[%c0_4, %c0_5] : memref<128x128xbf16, #tpu.memory_space<vmem>>, vector<128x128xbf16>
    %cst = arith.constant dense<0.000000e+00> : vector<16x128xf32>
    %6 = tpu.matmul %4, %5, %cst {dimension_numbers = #tpu.dot_dimension_numbers<[1], [0], [0], [1], [0, 0, 1, 1], [], []>} : vector<16x128xbf16>, vector<128x128xbf16>, vector<16x128xf32> -> vector<16x128xf32>
    %7 = arith.addf %3, %6 : vector<16x128xf32>
    %c0_6 = arith.constant 0 : index
    %c0_7 = arith.constant 0 : index
    %8 = vector.load %arg6[%c0_6, %c0_7] : memref<16x128xf32, #tpu.memory_space<vmem>>, vector<16x128xf32>
    tpu.vector_store %arg6[%c0_6, %c0_7], %7 {strides = array<i32>} : memref<16x128xf32, #tpu.memory_space<vmem>>, vector<16x128xf32>,
    %c0_i32_8 = arith.constant 0 : i32
    %9 = arith.cmpi eq, %arg2, %c0_i32_8 : i32
    %10 = arith.extui %9 : i1 to i32
    %c0_i32_9 = arith.constant 0 : i32
    %11 = arith.cmpi ne, %10, %c0_i32_9 : i32
    scf.if %11 {
      %c0_10 = arith.constant 0 : index
      %c0_11 = arith.constant 0 : index
      %12 = vector.load %arg6[%c0_10, %c0_11] : memref<16x128xf32, #tpu.memory_space<vmem>>, vector<16x128xf32>
      %cst_12 = arith.constant 0.176776692 : f32
      %13 = vector.broadcast %cst_12 : f32 to vector<16x128xf32>
      %14 = arith.mulf %12, %13 : vector<16x128xf32>
      %15 = arith.truncf %14 : vector<16x128xf32> to vector<16x128xbf16>
      %c0_13 = arith.constant 0 : index
      %c0_14 = arith.constant 0 : index
      %16 = vector.load %arg5[%c0_13, %c0_14] : memref<16x128xbf16, #tpu.memory_space<vmem>>, vector<16x128xbf16>
      tpu.vector_store %arg5[%c0_13, %c0_14], %15 {strides = array<i32>} : memref<16x128xbf16, #tpu.memory_space<vmem>>, vector<16x128xbf16>,
    } else {
    }
    return
  }
  func.func @transform_0(%arg0: i32, %arg1: i32, %arg2: i32) -> (i32, i32) {
    %c0_i32 = arith.constant 0 : i32
    return %arg0, %arg2 : i32, i32
  }
  func.func @transform_1(%arg0: i32, %arg1: i32, %arg2: i32) -> (i32, i32) {
    %c0_i32 = arith.constant 0 : i32
    return %arg2, %arg1 : i32, i32
  }
  func.func @transform_2(%arg0: i32, %arg1: i32, %arg2: i32) -> (i32, i32) {
    %c0_i32 = arith.constant 0 : i32
    return %arg0, %arg1 : i32, i32
  }
}

</mosaic_0001>

<llo_original>
// kernel: tpu_custom_call.1
$region0: #{tpu_custom_call.1}
  #allocation0 [shape = 'u32[]', space=smem, size = 0x4, offset = 0x4, fixed_abs, tag = 'smem constant byte address 0x4 - core index']
  #allocation1 [shape = 'u32[72,128]{1,0:T(1,128)}', space=vmem, size = 0x9000, scoped, tag = 'internal scratch']
  #allocation2 [shape = 'f32[16,128]{1,0:T(8,128)}', space=vmem, size = 0x2000, scoped, tag = 'scratch operand']
  %s0 = inlined_call_operand.vmem [shape: bf16[16,128], index: 0, kind: input, shape index: {}]
  %s1 = inlined_call_operand.vmem [shape: bf16[128,64], index: 1, kind: input, shape index: {}]
  %s2 = inlined_call_operand.hbm [shape: bf16[16,64], index: 2, kind: output, shape index: {}]
  %s3 = sld [smem:[#allocation0]]
  $region26: #{tpu_custom_call.1} parent=0
    _
  %s5 = ssub.s32 1, %s3
  %s6 = scalar_select 0, %s5, %s3
  $region1: #{tpu_custom_call.1} parent=0
    #allocation3 [shape = 'u8[4096]{0}', space=vmem, size = 0x1000, scoped, tag = 'output window, operand 0, single buffered']
    #allocation4 [shape = 's32[1]{0}', space=sflag, size = 0x4, scoped, tag = 'scoped memory for tpu_custom_call.1']
    %7 = vsyncpa [#allocation4], 0
    // Predicated region
    $region2: #{tpu_custom_call.1} parent=1 // pred_check
      _
    $region3: #{tpu_custom_call.1} parent=1 // pred_check_branch
      %9 = sbr.rel (0) target = $region5
    $region4: #{tpu_custom_call.1} parent=1 // pred_region
      _
    $region5: #{tpu_custom_call.1} parent=1 // pred_fallthru
      _
    // Predicated region
    $region6: #{tpu_custom_call.1} parent=1 // pred_check
      _
    $region7: #{tpu_custom_call.1} parent=1 // pred_check_branch
      %11 = sbr.rel (0) target = $region9
    $region8: #{tpu_custom_call.1} parent=1 // pred_region
      _
    $region9: #{tpu_custom_call.1} parent=1 // pred_fallthru
      _
    %p12 = scmp.eq.s32.totalorder 0, 0
    // Predicated region
    $region10: #{tpu_custom_call.1} parent=1 // pred_check
      %p13 = pneg %p12
    $region11: #{tpu_custom_call.1} parent=1 // pred_check_branch
      %15 = sbr.rel (%p13) target = $region13
    $region12: #{tpu_custom_call.1} parent=1 // pred_region
      %16 = vst [vmem:[#allocation2] sm:$0xff] 0.0
      %17 = vst [vmem:[#allocation2 + $0x8] sm:$0xff] 0.0
    $region13: #{tpu_custom_call.1} parent=1 // pred_fallthru
      _
    %v18 = vld [vmem:[#allocation2] sm:$0xff]
    %v19 = vld [vmem:[#allocation2 + $0x8] sm:$0xff]
    %v20 = vld [vmem:[%s0] sm:$0xf]
    %v21 = vld [vmem:[%s0 + $0x4] sm:$0xf]
    %v22 = vld [vmem:[%s1] sm:$0xf]
    %v23 = vld [vmem:[%s1 + $0x4] sm:$0xf]
    %v24 = vld [vmem:[%s1 + $0x8] sm:$0xf]
    %v25 = vld [vmem:[%s1 + $0xc] sm:$0xf]
    %v26 = vld [vmem:[%s1 + $0x10] sm:$0xf]
    %v27 = vld [vmem:[%s1 + $0x14] sm:$0xf]
    %v28 = vld [vmem:[%s1 + $0x18] sm:$0xf]
    %v29 = vld [vmem:[%s1 + $0x1c] sm:$0xf]
    %v30 = vld [vmem:[%s1 + $0x20] sm:$0xf]
    %v31 = vld [vmem:[%s1 + $0x24] sm:$0xf]
    %v32 = vld [vmem:[%s1 + $0x28] sm:$0xf]
    %v33 = vld [vmem:[%s1 + $0x2c] sm:$0xf]
    %v34 = vld [vmem:[%s1 + $0x30] sm:$0xf]
    %v35 = vld [vmem:[%s1 + $0x34] sm:$0xf]
    %v36 = vld [vmem:[%s1 + $0x38] sm:$0xf]
    %v37 = vld [vmem:[%s1 + $0x3c] sm:$0xf]
    %v40 = vunpack.c.l.b16 %v20
    %v41 = vunpack.c.l.b16 %v21
    %v42 = vpack.c.b16 %v41, %v40
    %v60 = vunpack.c.l.b16 %v22
    %v61 = vunpack.c.l.b16 %v23
    %v62 = vunpack.c.l.b16 %v24
    %v63 = vunpack.c.l.b16 %v25
    %v64 = vunpack.c.l.b16 %v26
    %v65 = vunpack.c.l.b16 %v27
    %v66 = vunpack.c.l.b16 %v28
    %v67 = vunpack.c.l.b16 %v29
    %v68 = vunpack.c.l.b16 %v30
    %v69 = vunpack.c.l.b16 %v31
    %v70 = vunpack.c.l.b16 %v32
    %v71 = vunpack.c.l.b16 %v33
    %v72 = vunpack.c.l.b16 %v34
    %v73 = vunpack.c.l.b16 %v35
    %v74 = vunpack.c.l.b16 %v36
    %v75 = vunpack.c.l.b16 %v37
    %v76 = vpack.c.b16 %v61, %v60
    %v77 = vpack.c.b16 %v63, %v62
    %v78 = vpack.c.b16 %v65, %v64
    %v79 = vpack.c.b16 %v67, %v66
    %v80 = vpack.c.b16 %v69, %v68
    %v81 = vpack.c.b16 %v71, %v70
    %v82 = vpack.c.b16 %v73, %v72
    %v83 = vpack.c.b16 %v75, %v74
    %92 = vmatpush.bf16.msra.mxu0 %v83
    %93 = vmatpush.bf16.msra.mxu0 %v82
    %94 = vmatpush.bf16.msra.mxu0 %v81
    %95 = vmatpush.bf16.msra.mxu0 %v80
    %96 = vmatpush.bf16.msra.mxu0 %v79
    %97 = vmatpush.bf16.msra.mxu0 %v78
    %98 = vmatpush.bf16.msra.mxu0 %v77
    %99 = vmatpush.bf16.msra.mxu0 %v76
    %100 = vmatmul.bf16.gmra.mxu0 %v42
    %v101 = vpop.f32.mrf.mxu0
    %v102 = vadd.f32 0.0, %v101
    %v103 = vpop.f32.mrf.mxu0
    %v104 = vadd.f32 0.0, %v103
    %105 = vdwg.mxu0
    %v106 = vadd.f32 %v18, %v102
    %v107 = vadd.f32 %v19, %v104
    %108 = vst [vmem:[#allocation2] sm:$0xff] %v106
    %109 = vst [vmem:[#allocation2 + $0x8] sm:$0xff] %v107
    // Predicated region
    $region14: #{tpu_custom_call.1} parent=1 // pred_check
      %p110 = pneg %p12
    $region15: #{tpu_custom_call.1} parent=1 // pred_check_branch
      %112 = sbr.rel (%p110) target = $region17
    $region16: #{tpu_custom_call.1} parent=1 // pred_region
      %v113 = vld [vmem:[#allocation2] sm:$0xff]
      %v114 = vld [vmem:[#allocation2 + $0x8] sm:$0xff]
      %v115 = vmul.f32 %v113, 0.17677669
      %v116 = vmul.f32 %v114, 0.17677669
      %v117 = vpack.c.bf16 %v115, %v115
      %v118 = vpack.c.bf16 %v116, %v116
      %119 = vst [vmem:[#allocation3] sm:$0xf] %v117
      %120 = vst [vmem:[#allocation3 + $0x4] sm:$0xf] %v118
    $region17: #{tpu_custom_call.1} parent=1 // pred_fallthru
      _
    // Predicated region
    $region18: #{tpu_custom_call.1} parent=1 // pred_check
      _
    $region19: #{tpu_custom_call.1} parent=1 // pred_check_branch
      %122 = sbr.rel (0) target = $region21
    $region20: #{tpu_custom_call.1} parent=1 // pred_region
      %124 = vsyncadd [#allocation4], 0
      %s125 = sshll.u32 [#allocation3], 4
      %s126 = int_to_ptr.vmem [resolvable:$true] %s125
      %s127 = sshll.u32 %s2, 4
      %s128 = int_to_ptr.hbm [resolvable:$true] %s127
      %133 = dma.vmem_to_hbm [thread:$0]  %s126, 128, %s128, [#allocation4], 64, 64, 4
    $region21: #{tpu_custom_call.1} parent=1 // pred_fallthru
      _
    // Predicated region
    $region22: #{tpu_custom_call.1} parent=1 // pred_check
      _
    $region23: #{tpu_custom_call.1} parent=1 // pred_check_branch
      %135 = sbr.rel (0) target = $region25
    $region24: #{tpu_custom_call.1} parent=1 // pred_region
      %137 = dma.done [#allocation4], 128
    $region25: #{tpu_custom_call.1} parent=1 // pred_fallthru
      _
    %138 = vsyncpa [#allocation4], 1

</llo_original>
